<compile_context>
chip_gen: v5e
topology: v5e:2x2
jax: 0.10.0
libtpu: 0.0.40
codegen_flags: <defaults>
</compile_context>

<pallas_src>
import jax
import jax.numpy as jnp
from jax.experimental import pallas as pl
from jax.experimental.pallas import tpu as pltpu

B, S, H_IN, H_MID, H_OUT = 2, 8, 32, 64, 32
LANE = 128
MAX_TM = 2048  # rows per grid step at scale


def _round_up(x, m):
    return ((x + m - 1) // m) * m


def mlp_part_kernel(x_ref, w1_ref, b1_ref, w2_ref, b2_ref, o_ref):
    # x_ref : f32  [TM, hin]        (cast to bf16 in-kernel; VPU work hidden under DMA)
    # w1_ref: bf16 [hin, hp_mid]    b1_ref: f32 [1, hp_mid]   (hidden dim padded to 128)
    # w2_ref: bf16 [hp_mid, hout]   b2_ref: f32 [1, hout]
    # o_ref : bf16 [TM, hout]
    x = x_ref[...].astype(jnp.bfloat16)
    h = jnp.dot(x, w1_ref[...], preferred_element_type=jnp.float32)
    h = jnp.maximum(h + b1_ref[...], 0.0)                       # bias + ReLU in f32 (VPU)
    y = jnp.dot(h.astype(jnp.bfloat16), w2_ref[...],
                preferred_element_type=jnp.float32)
    o_ref[...] = (y + b2_ref[...]).astype(o_ref.dtype)


def prepare_part_params(w1, b1, w2, b2):
    """One-time (module-init) weight prep: bf16 cast + pad hidden dim to 128 lanes.

    Padded columns of w1/b1 and rows of w2 are zero, so the padding is exact
    for matmul + ReLU.  Hoisted out of the per-forward path so no pad/convert
    XLA ops run per call.
    """
    hin, hmid = w1.shape
    hout = w2.shape[1]
    hp_mid = _round_up(hmid, LANE)
    w1_p = jnp.zeros((hin, hp_mid), jnp.bfloat16).at[:, :hmid].set(
        w1.astype(jnp.bfloat16))
    b1_p = jnp.zeros((1, hp_mid), jnp.float32).at[:, :hmid].set(
        b1.reshape(1, hmid).astype(jnp.float32))
    w2_p = jnp.zeros((hp_mid, hout), jnp.bfloat16).at[:hmid, :].set(
        w2.astype(jnp.bfloat16))
    b2_p = b2.reshape(1, hout).astype(jnp.float32)
    return w1_p, b1_p, w2_p, b2_p


def model_part_forward(x, w1_p, b1_p, w2_p, b2_p, *, hidden_dim=H_MID):
    """ModelPart.forward(x) == part(x), part = Linear(32,64)->ReLU->Linear(64,32).

    Returns bf16 (deliberate: halves writeback bytes of the mem-bound kernel).
    """
    bsz, seq, hin = x.shape
    hp_mid, hout = w2_p.shape
    M = bsz * seq

    # Row tile: multiple of 16 keeps bf16-output sublane packing clean; cap at
    # MAX_TM so double-buffered tiles stay tiny on all generations (incl. the
    # v5e 16 MiB scoped-VMEM default) while M > MAX_TM yields >= 2 "parallel"
    # grid steps for the two v7x TensorCores.
    TM = _round_up(M, 16) if M <= MAX_TM else MAX_TM
    M_pad = _round_up(M, TM)

    x2d = x.reshape(M, hin).astype(jnp.float32)
    if M_pad != M:
        x2d = jnp.pad(x2d, ((0, M_pad - M), (0, 0)))

    grid = (M_pad // TM,)

    # Cost estimate from the *real* (unpadded) dims.
    cost = pl.CostEstimate(
        flops=2 * M * (hin * hidden_dim + hidden_dim * hout),
        transcendentals=0,
        bytes_accessed=(M * hin * 4 + M * hout * 2
                        + w1_p.size * 2 + w2_p.size * 2
                        + b1_p.size * 4 + b2_p.size * 4),
    )

    out = pl.pallas_call(
        mlp_part_kernel,
        out_shape=jax.ShapeDtypeStruct((M_pad, hout), jnp.bfloat16),
        grid=grid,
        in_specs=[
            pl.BlockSpec((TM, hin), lambda i: (i, 0)),       # activations: tiled over rows
            pl.BlockSpec((hin, hp_mid), lambda i: (0, 0)),   # weights/biases pinned
            pl.BlockSpec((1, hp_mid), lambda i: (0, 0)),
            pl.BlockSpec((hp_mid, hout), lambda i: (0, 0)),
            pl.BlockSpec((1, hout), lambda i: (0, 0)),
        ],
        out_specs=pl.BlockSpec((TM, hout), lambda i: (i, 0)),
        compiler_params=pltpu.CompilerParams(
            dimension_semantics=("parallel",)),
        cost_estimate=cost,
    )(x2d, w1_p, b1_p, w2_p, b2_p)

    return out[:M].reshape(bsz, seq, hout)


def reference_forward_f32(x, w1, b1, w2, b2):
    h = jnp.maximum(jnp.einsum("bsh,hm->bsm", x, w1) + b1.reshape(-1), 0.0)
    return jnp.einsum("bsm,mo->bso", h, w2) + b2.reshape(-1)


def reference_forward_bf16(x, w1, b1, w2, b2):
    # Emulates the kernel's bf16-operand / f32-accumulate numerics + bf16 output.
    h = jnp.einsum("bsh,hm->bsm", x.astype(jnp.bfloat16), w1.astype(jnp.bfloat16),
                   preferred_element_type=jnp.float32) + b1.reshape(-1)
    h = jnp.maximum(h, 0.0)
    y = jnp.einsum("bsm,mo->bso", h.astype(jnp.bfloat16), w2.astype(jnp.bfloat16),
                   preferred_element_type=jnp.float32) + b2.reshape(-1)
    return y.astype(jnp.bfloat16)


if __name__ == "__main__":
    key = jax.random.PRNGKey(0)
    k_x, k_w1, k_b1, k_w2, k_b2 = jax.random.split(key, 5)

    # Deterministic synthetic parameters (shapes from the chosen `part`).
    x = jax.random.normal(k_x, (B, S, H_IN), dtype=jnp.float32)
    w1 = jax.random.normal(k_w1, (H_IN, H_MID), dtype=jnp.float32) * 0.1
    b1 = jax.random.normal(k_b1, (1, H_MID), dtype=jnp.float32) * 0.1
    w2 = jax.random.normal(k_w2, (H_MID, H_OUT), dtype=jnp.float32) * 0.1
    b2 = jax.random.normal(k_b2, (1, H_OUT), dtype=jnp.float32) * 0.1

    # One-time weight prep (hoisted out of the forward path).
    params = prepare_part_params(w1, b1, w2, b2)
    params = jax.tree_util.tree_map(jax.block_until_ready, params)

    fwd = jax.jit(model_part_forward)
    out = fwd(x, *params)
    jax.block_until_ready(out)

    assert out.shape == (B, S, H_OUT)
    assert out.dtype == jnp.bfloat16

    out_f32 = out.astype(jnp.float32)
    ref_bf16 = reference_forward_bf16(x, w1, b1, w2, b2).astype(jnp.float32)
    ref_f32 = reference_forward_f32(x, w1, b1, w2, b2)
    assert jnp.allclose(out_f32, ref_bf16, atol=1e-2, rtol=1e-2), (
        "max abs err vs bf16 ref:",
        float(jnp.max(jnp.abs(out_f32 - ref_bf16))))
    assert jnp.allclose(out_f32, ref_f32, atol=6e-2, rtol=6e-2), (
        "max abs err vs f32 ref:",
        float(jnp.max(jnp.abs(out_f32 - ref_f32))))

    print("KERNEL_OK")
</pallas_src>

<mosaic_0001>
module attributes {stable_mosaic.version = 11 : i64} {
  func.func @mlp_part_kernel(%arg0: i32, %arg1: memref<16x32xf32, #tpu.memory_space<vmem>>, %arg2: memref<32x128xbf16, #tpu.memory_space<vmem>>, %arg3: memref<1x128xf32, #tpu.memory_space<vmem>>, %arg4: memref<128x32xbf16, #tpu.memory_space<vmem>>, %arg5: memref<1x32xf32, #tpu.memory_space<vmem>>, %arg6: memref<16x32xbf16, #tpu.memory_space<vmem>>) attributes {dimension_semantics = [#tpu.dimension_semantics<parallel>], iteration_bounds = array<i64: 1>, scalar_prefetch = 0 : i64, scratch_operands = 0 : i64, tpu.core_type = #tpu.core_type<tc>, window_params = [{transform_indices = @transform_0, window_bounds = array<i64: 16, 32>}, {pipeline_mode = #tpu.pipeline_mode<synchronous>, transform_indices = @transform_1, window_bounds = array<i64: 32, 128>}, {pipeline_mode = #tpu.pipeline_mode<synchronous>, transform_indices = @transform_2, window_bounds = array<i64: 1, 128>}, {pipeline_mode = #tpu.pipeline_mode<synchronous>, transform_indices = @transform_3, window_bounds = array<i64: 128, 32>}, {pipeline_mode = #tpu.pipeline_mode<synchronous>, transform_indices = @transform_4, window_bounds = array<i64: 1, 32>}, {transform_indices = @transform_5, window_bounds = array<i64: 16, 32>}]} {
    %c0 = arith.constant 0 : index
    %c0_0 = arith.constant 0 : index
    %0 = vector.load %arg1[%c0, %c0_0] : memref<16x32xf32, #tpu.memory_space<vmem>>, vector<16x32xf32>
    %1 = arith.truncf %0 : vector<16x32xf32> to vector<16x32xbf16>
    %c0_1 = arith.constant 0 : index
    %c0_2 = arith.constant 0 : index
    %2 = vector.load %arg2[%c0_1, %c0_2] : memref<32x128xbf16, #tpu.memory_space<vmem>>, vector<32x128xbf16>
    %cst = arith.constant dense<0.000000e+00> : vector<16x128xf32>
    %3 = tpu.matmul %1, %2, %cst {dimension_numbers = #tpu.dot_dimension_numbers<[1], [0], [0], [1], [0, 0, 1, 1], [], []>} : vector<16x32xbf16>, vector<32x128xbf16>, vector<16x128xf32> -> vector<16x128xf32>
    %c0_3 = arith.constant 0 : index
    %c0_4 = arith.constant 0 : index
    %4 = vector.load %arg3[%c0_3, %c0_4] : memref<1x128xf32, #tpu.memory_space<vmem>>, vector<1x128xf32>
    %5 = vector.broadcast %4 : vector<1x128xf32> to vector<16x128xf32>
    %6 = arith.addf %3, %5 : vector<16x128xf32>
    %cst_5 = arith.constant 0.000000e+00 : f32
    %7 = vector.broadcast %cst_5 : f32 to vector<16x128xf32>
    %8 = arith.maximumf %6, %7 : vector<16x128xf32>
    %9 = arith.truncf %8 : vector<16x128xf32> to vector<16x128xbf16>
    %c0_6 = arith.constant 0 : index
    %c0_7 = arith.constant 0 : index
    %10 = vector.load %arg4[%c0_6, %c0_7] : memref<128x32xbf16, #tpu.memory_space<vmem>>, vector<128x32xbf16>
    %cst_8 = arith.constant dense<0.000000e+00> : vector<16x32xf32>
    %11 = tpu.matmul %9, %10, %cst_8 {dimension_numbers = #tpu.dot_dimension_numbers<[1], [0], [0], [1], [0, 0, 1, 1], [], []>} : vector<16x128xbf16>, vector<128x32xbf16>, vector<16x32xf32> -> vector<16x32xf32>
    %c0_9 = arith.constant 0 : index
    %c0_10 = arith.constant 0 : index
    %12 = vector.load %arg5[%c0_9, %c0_10] : memref<1x32xf32, #tpu.memory_space<vmem>>, vector<1x32xf32>
    %13 = vector.broadcast %12 : vector<1x32xf32> to vector<16x32xf32>
    %14 = arith.addf %11, %13 : vector<16x32xf32>
    %15 = arith.truncf %14 : vector<16x32xf32> to vector<16x32xbf16>
    %c0_11 = arith.constant 0 : index
    %c0_12 = arith.constant 0 : index
    %16 = vector.load %arg6[%c0_11, %c0_12] : memref<16x32xbf16, #tpu.memory_space<vmem>>, vector<16x32xbf16>
    tpu.vector_store %arg6[%c0_11, %c0_12], %15 {strides = array<i32>} : memref<16x32xbf16, #tpu.memory_space<vmem>>, vector<16x32xbf16>,
    return
  }
  func.func @transform_0(%arg0: i32) -> (i32, i32) {
    %c0_i32 = arith.constant 0 : i32
    %c0_i32_0 = arith.constant 0 : i32
    return %arg0, %c0_i32 : i32, i32
  }
  func.func @transform_1(%arg0: i32) -> (i32, i32) {
    %c0_i32 = arith.constant 0 : i32
    %c0_i32_0 = arith.constant 0 : i32
    %c0_i32_1 = arith.constant 0 : i32
    return %c0_i32, %c0_i32_0 : i32, i32
  }
  func.func @transform_2(%arg0: i32) -> (i32, i32) {
    %c0_i32 = arith.constant 0 : i32
    %c0_i32_0 = arith.constant 0 : i32
    %c0_i32_1 = arith.constant 0 : i32
    return %c0_i32, %c0_i32_0 : i32, i32
  }
  func.func @transform_3(%arg0: i32) -> (i32, i32) {
    %c0_i32 = arith.constant 0 : i32
    %c0_i32_0 = arith.constant 0 : i32
    %c0_i32_1 = arith.constant 0 : i32
    return %c0_i32, %c0_i32_0 : i32, i32
  }
  func.func @transform_4(%arg0: i32) -> (i32, i32) {
    %c0_i32 = arith.constant 0 : i32
    %c0_i32_0 = arith.constant 0 : i32
    %c0_i32_1 = arith.constant 0 : i32
    return %c0_i32, %c0_i32_0 : i32, i32
  }
  func.func @transform_5(%arg0: i32) -> (i32, i32) {
    %c0_i32 = arith.constant 0 : i32
    %c0_i32_0 = arith.constant 0 : i32
    return %arg0, %c0_i32 : i32, i32
  }
}

</mosaic_0001>

<llo_original>
// kernel: model_part_forward.1
$region0: #{model_part_forward.1}
  #allocation0 [shape = 'u32[]', space=smem, size = 0x4, offset = 0x4, fixed_abs, tag = 'smem constant byte address 0x4 - core index']
  #allocation1 [shape = 'u32[72,128]{1,0:T(1,128)}', space=vmem, size = 0x9000, scoped, tag = 'internal scratch']
  %s0 = inlined_call_operand.vmem [shape: f32[16,32], index: 0, kind: input, shape index: {}]
  %s1 = inlined_call_operand.vmem [shape: bf16[32,128], index: 1, kind: input, shape index: {}]
  %s2 = inlined_call_operand.vmem [shape: f32[1,128], index: 2, kind: input, shape index: {}]
  %s3 = inlined_call_operand.vmem [shape: bf16[128,32], index: 3, kind: input, shape index: {}]
  %s4 = inlined_call_operand.vmem [shape: f32[1,32], index: 4, kind: input, shape index: {}]
  %s5 = inlined_call_operand.hbm [shape: bf16[16,32], index: 5, kind: output, shape index: {}]
  %s6 = sld [smem:[#allocation0]]
  $region30: #{model_part_forward.1} parent=0
    _
  %s8 = ssub.s32 1, %s6
  %s9 = scalar_select 0, %s8, %s6
  $region1: #{model_part_forward.1} parent=0
    #allocation2 [shape = 'u8[4096]{0}', space=vmem, size = 0x1000, scoped, tag = 'output window, operand 0, single buffered']
    #allocation3 [shape = 's32[1]{0}', space=sflag, size = 0x4, scoped, tag = 'scoped memory for model_part_forward.1']
    %10 = vsyncpa [#allocation3], 0
    // Predicated region
    $region2: #{model_part_forward.1} parent=1 // pred_check
      _
    $region3: #{model_part_forward.1} parent=1 // pred_check_branch
      %12 = sbr.rel (0) target = $region5
    $region4: #{model_part_forward.1} parent=1 // pred_region
      _
    $region5: #{model_part_forward.1} parent=1 // pred_fallthru
      _
    // Predicated region
    $region6: #{model_part_forward.1} parent=1 // pred_check
      _
    $region7: #{model_part_forward.1} parent=1 // pred_check_branch
      %14 = sbr.rel (0) target = $region9
    $region8: #{model_part_forward.1} parent=1 // pred_region
      _
    $region9: #{model_part_forward.1} parent=1 // pred_fallthru
      _
    // Predicated region
    $region10: #{model_part_forward.1} parent=1 // pred_check
      _
    $region11: #{model_part_forward.1} parent=1 // pred_check_branch
      %16 = sbr.rel (0) target = $region13
    $region12: #{model_part_forward.1} parent=1 // pred_region
      _
    $region13: #{model_part_forward.1} parent=1 // pred_fallthru
      _
    // Predicated region
    $region14: #{model_part_forward.1} parent=1 // pred_check
      _
    $region15: #{model_part_forward.1} parent=1 // pred_check_branch
      %18 = sbr.rel (0) target = $region17
    $region16: #{model_part_forward.1} parent=1 // pred_region
      _
    $region17: #{model_part_forward.1} parent=1 // pred_fallthru
      _
    // Predicated region
    $region18: #{model_part_forward.1} parent=1 // pred_check
      _
    $region19: #{model_part_forward.1} parent=1 // pred_check_branch
      %20 = sbr.rel (0) target = $region21
    $region20: #{model_part_forward.1} parent=1 // pred_region
      _
    $region21: #{model_part_forward.1} parent=1 // pred_fallthru
      _
    %v22 = vld [vmem:[%s0] sm:$0xff]
    %v23 = vld [vmem:[%s0 + $0x8] sm:$0xff]
    %v24 = vpack.c.bf16 %v23, %v22
    %v25 = vld [vmem:[%s1] sm:$0xf]
    %v26 = vld [vmem:[%s1 + $0x4] sm:$0xf]
    %v27 = vld [vmem:[%s1 + $0x8] sm:$0xf]
    %v28 = vld [vmem:[%s1 + $0xc] sm:$0xf]
    %v29 = vld [vmem:[%s2] sm:$0x1]
    %v31 = vperm.slane %v29, 0
    %v37 = vunpack.c.l.b16 %v25
    %v38 = vunpack.c.l.b16 %v26
    %v39 = vunpack.c.l.b16 %v27
    %v40 = vunpack.c.l.b16 %v28
    %v41 = vpack.c.b16 %v38, %v37
    %v42 = vpack.c.b16 %v40, %v39
    %vm45 = vcmask 261120
    %v47 = vsel %vm45, %v24, 0
    %49 = vmatpush.bf16.msra.mxu0 0
    %50 = vmatpush.bf16.msra.mxu0 0
    %51 = vmatpush.bf16.msra.mxu0 0
    %52 = vmatpush.bf16.msra.mxu0 0
    %53 = vmatpush.bf16.msra.mxu0 0
    %54 = vmatpush.bf16.msra.mxu0 0
    %55 = vmatpush.bf16.msra.mxu0 %v42
    %56 = vmatpush.bf16.msra.mxu0 %v41
    %57 = vmatmul.bf16.gmra.mxu0 %v47
    %v58 = vpop.f32.mrf.mxu0
    %v59 = vadd.f32 %v31, %v58
    %v60 = vpop.f32.mrf.mxu0
    %v61 = vadd.f32 %v31, %v60
    %62 = vdwg.mxu0
    %v63 = vmax.f32 %v59, 0.0
    %v64 = vmax.f32 %v61, 0.0
    %v65 = vpack.c.bf16 %v64, %v63
    %v66 = vld [vmem:[%s3] sm:$0xf]
    %v67 = vld [vmem:[%s3 + $0x4] sm:$0xf]
    %v68 = vld [vmem:[%s3 + $0x8] sm:$0xf]
    %v69 = vld [vmem:[%s3 + $0xc] sm:$0xf]
    %v70 = vld [vmem:[%s3 + $0x10] sm:$0xf]
    %v71 = vld [vmem:[%s3 + $0x14] sm:$0xf]
    %v72 = vld [vmem:[%s3 + $0x18] sm:$0xf]
    %v73 = vld [vmem:[%s3 + $0x1c] sm:$0xf]
    %v74 = vld [vmem:[%s3 + $0x20] sm:$0xf]
    %v75 = vld [vmem:[%s3 + $0x24] sm:$0xf]
    %v76 = vld [vmem:[%s3 + $0x28] sm:$0xf]
    %v77 = vld [vmem:[%s3 + $0x2c] sm:$0xf]
    %v78 = vld [vmem:[%s3 + $0x30] sm:$0xf]
    %v79 = vld [vmem:[%s3 + $0x34] sm:$0xf]
    %v80 = vld [vmem:[%s3 + $0x38] sm:$0xf]
    %v81 = vld [vmem:[%s3 + $0x3c] sm:$0xf]
    %v82 = vld [vmem:[%s4] sm:$0x1]
    %v84 = vperm.slane %v82, 0
    %v102 = vunpack.c.l.b16 %v66
    %v103 = vunpack.c.l.b16 %v67
    %v104 = vunpack.c.l.b16 %v68
    %v105 = vunpack.c.l.b16 %v69
    %v106 = vunpack.c.l.b16 %v70
    %v107 = vunpack.c.l.b16 %v71
    %v108 = vunpack.c.l.b16 %v72
    %v109 = vunpack.c.l.b16 %v73
    %v110 = vunpack.c.l.b16 %v74
    %v111 = vunpack.c.l.b16 %v75
    %v112 = vunpack.c.l.b16 %v76
    %v113 = vunpack.c.l.b16 %v77
    %v114 = vunpack.c.l.b16 %v78
    %v115 = vunpack.c.l.b16 %v79
    %v116 = vunpack.c.l.b16 %v80
    %v117 = vunpack.c.l.b16 %v81
    %v118 = vpack.c.b16 %v103, %v102
    %v119 = vpack.c.b16 %v105, %v104
    %v120 = vpack.c.b16 %v107, %v106
    %v121 = vpack.c.b16 %v109, %v108
    %v122 = vpack.c.b16 %v111, %v110
    %v123 = vpack.c.b16 %v113, %v112
    %v124 = vpack.c.b16 %v115, %v114
    %v125 = vpack.c.b16 %v117, %v116
    %134 = vmatpush.bf16.msra.mxu0 %v125
    %135 = vmatpush.bf16.msra.mxu0 %v124
    %136 = vmatpush.bf16.msra.mxu0 %v123
    %137 = vmatpush.bf16.msra.mxu0 %v122
    %138 = vmatpush.bf16.msra.mxu0 %v121
    %139 = vmatpush.bf16.msra.mxu0 %v120
    %140 = vmatpush.bf16.msra.mxu0 %v119
    %141 = vmatpush.bf16.msra.mxu0 %v118
    %142 = vmatmul.bf16.gmra.mxu0 %v65
    %v143 = vpop.f32.mrf.mxu0
    %v144 = vadd.f32 %v84, %v143
    %v145 = vpop.f32.mrf.mxu0
    %v146 = vadd.f32 %v84, %v145
    %147 = vdwg.mxu0
    %v148 = vpack.c.bf16 %v144, %v144
    %v149 = vpack.c.bf16 %v146, %v146
    %vm150 = vcmask 257024
    %151 = vst.msk [vmem:[#allocation2] sm:$0xf] %vm150, %v148
    %152 = vst.msk [vmem:[#allocation2 + $0x4] sm:$0xf] %vm150, %v149
    // Predicated region
    $region22: #{model_part_forward.1} parent=1 // pred_check
      _
    $region23: #{model_part_forward.1} parent=1 // pred_check_branch
      %154 = sbr.rel (0) target = $region25
    $region24: #{model_part_forward.1} parent=1 // pred_region
      %156 = vsyncadd [#allocation3], 0
      %s157 = sshll.u32 [#allocation2], 4
      %s158 = int_to_ptr.vmem [resolvable:$true] %s157
      %s159 = sshll.u32 %s5, 4
      %s160 = int_to_ptr.hbm [resolvable:$true] %s159
      %165 = dma.vmem_to_hbm [thread:$0]  %s158, 128, %s160, [#allocation3], 64, 64, 4
    $region25: #{model_part_forward.1} parent=1 // pred_fallthru
      _
    // Predicated region
    $region26: #{model_part_forward.1} parent=1 // pred_check
      _
    $region27: #{model_part_forward.1} parent=1 // pred_check_branch
      %167 = sbr.rel (0) target = $region29
    $region28: #{model_part_forward.1} parent=1 // pred_region
      %169 = dma.done [#allocation3], 128
    $region29: #{model_part_forward.1} parent=1 // pred_fallthru
      _
    %170 = vsyncpa [#allocation3], 1

</llo_original>
